<compile_context>
chip_gen: v7x
topology: tpu7x:2x2x1
jax: 0.10.0
libtpu: 0.0.40
codegen_flags: <defaults>
</compile_context>

<pallas_src>
import jax
import jax.numpy as jnp
from jax import lax
from jax.experimental import pallas as pl
from jax.experimental.pallas import tpu as pltpu


def _embedding_kernel(idx_ref, emb_ref, logits_ref, probs_ref):
    # idx_ref:    (tile_n, 1) int32  token ids for this tile (VMEM)
    # emb_ref:    (V, E)      table, VMEM-resident across all grid steps
    # logits_ref: (tile_n, E) output tile
    # probs_ref:  (tile_n, E) output tile
    ids = idx_ref[...]                       # (tile_n, 1)
    tbl = emb_ref[...]                       # (V, E)
    tile_n = ids.shape[0]
    vocab = tbl.shape[0]

    # Guard out-of-range ids (PyTorch would raise; silent OOB would be worse).
    ids = jnp.clip(ids, 0, vocab - 1)

    # one_hot @ embedding on the MXU (same math as F.one_hot(idx) @ table).
    iota = lax.broadcasted_iota(jnp.int32, (tile_n, vocab), 1)
    one_hot = (iota == ids).astype(tbl.dtype)            # (tile_n, V)
    logits = jnp.dot(one_hot, tbl, preferred_element_type=jnp.float32)
    logits_ref[...] = logits.astype(logits_ref.dtype)

    # counts = exp(logits); probs = counts / counts.sum(-1).
    # Max-subtraction is shift-invariant -> identical probs, overflow-safe.
    m = jnp.max(logits, axis=-1, keepdims=True)
    counts = jnp.exp(logits - m)
    denom = jnp.sum(counts, axis=-1, keepdims=True)
    probs_ref[...] = (counts / denom).astype(probs_ref.dtype)


def embedding_forward(idx, embedding, tile_n=None):
    """idx: (B, T) int; embedding: (V, E) -> (logits, probs), each (B, T, E) f32."""
    B, T = idx.shape
    V, E = embedding.shape
    N = B * T

    # This kernel keeps the table VMEM-resident; fine for small/medium tables.
    table_bytes = V * E * jnp.dtype(embedding.dtype).itemsize
    assert table_bytes <= 16 * 1024 * 1024, (
        "table too large for the VMEM-resident path"
    )  # TODO(synk): DMA row-gather fallback for very large vocabularies

    if tile_n is None:
        # Bounded tile (>=8 sublanes, <=256), preferring >=2 grid steps so the
        # "parallel" axis can shard across TensorCores on v7x.
        tile_n = min(256, max(8, pl.next_power_of_2(pl.cdiv(max(N, 1), 2))))
    assert tile_n % 8 == 0, "tile_n must be a multiple of 8 (sublane alignment)"

    # Pad the flattened token axis to a multiple of tile_n (tail handled in
    # the wrapper; padded rows are computed with token 0 and sliced off).
    n_tiles = pl.cdiv(N, tile_n)
    n_pad = n_tiles * tile_n
    idx_flat = idx.reshape(N).astype(jnp.int32)
    if n_pad != N:
        idx_flat = jnp.pad(idx_flat, (0, n_pad - N))
    idx2d = idx_flat.reshape(n_pad, 1)

    logits_flat, probs_flat = pl.pallas_call(
        _embedding_kernel,
        out_shape=(
            jax.ShapeDtypeStruct((n_pad, E), jnp.float32),
            jax.ShapeDtypeStruct((n_pad, E), jnp.float32),
        ),
        grid=(n_tiles,),
        in_specs=[
            pl.BlockSpec((tile_n, 1), lambda i: (i, 0)),   # token ids per tile
            pl.BlockSpec((V, E), lambda i: (0, 0)),        # table resident in VMEM
        ],
        out_specs=(
            pl.BlockSpec((tile_n, E), lambda i: (i, 0)),
            pl.BlockSpec((tile_n, E), lambda i: (i, 0)),
        ),
        compiler_params=pltpu.CompilerParams(
            dimension_semantics=("parallel",),  # independent token tiles
        ),
    )(idx2d, embedding)

    logits = logits_flat[:N].reshape(B, T, E)
    probs = probs_flat[:N].reshape(B, T, E)
    return logits, probs


def _reference(idx, embedding):
    one_hot = jax.nn.one_hot(idx, embedding.shape[0], dtype=jnp.float32)
    logits = one_hot @ embedding.astype(jnp.float32)
    counts = jnp.exp(logits)
    probs = counts / counts.sum(-1, keepdims=True)
    return logits, probs


if __name__ == "__main__":
    # Module hyperparameters (small, consistent with the forward pass).
    block_size = 8       # T
    batch_size = 2       # B
    vocab_size = 32      # V
    embedding_size = 32  # E

    key = jax.random.PRNGKey(0)
    k_idx, k_emb, k_idx2 = jax.random.split(key, 3)

    # PyTorch draws the table with torch.randn inside forward; here it is a
    # deterministic in-script init (table creation is host-side).
    idx = jax.random.randint(
        k_idx, (batch_size, block_size), 0, vocab_size, dtype=jnp.int32
    )
    embedding = jax.random.normal(
        k_emb, (vocab_size, embedding_size), dtype=jnp.float32
    )

    logits_ref, probs_ref = _reference(idx, embedding)

    # Default tiling: tile_n=8 -> grid=(2,), exercising the multi-step path.
    logits, probs = embedding_forward(idx, embedding)
    jax.block_until_ready((logits, probs))

    assert logits.shape == (batch_size, block_size, embedding_size)
    assert probs.shape == (batch_size, block_size, embedding_size)
    assert jnp.allclose(logits, logits_ref, atol=1e-6)
    assert jnp.allclose(probs, probs_ref, atol=1e-5, rtol=1e-5)
    assert jnp.allclose(probs.sum(-1), 1.0, atol=1e-5)

    # Single-tile path.
    logits1, probs1 = embedding_forward(idx, embedding, tile_n=16)
    jax.block_until_ready((logits1, probs1))
    assert jnp.allclose(logits1, logits_ref, atol=1e-6)
    assert jnp.allclose(probs1, probs_ref, atol=1e-5, rtol=1e-5)

    # Non-divisible token count (B=3, T=5 -> N=15) exercises the padded tail.
    idx_odd = jax.random.randint(k_idx2, (3, 5), 0, vocab_size, dtype=jnp.int32)
    logits_odd_ref, probs_odd_ref = _reference(idx_odd, embedding)
    logits_odd, probs_odd = embedding_forward(idx_odd, embedding)
    jax.block_until_ready((logits_odd, probs_odd))
    assert logits_odd.shape == (3, 5, embedding_size)
    assert jnp.allclose(logits_odd, logits_odd_ref, atol=1e-6)
    assert jnp.allclose(probs_odd, probs_odd_ref, atol=1e-5, rtol=1e-5)
    assert jnp.allclose(probs_odd.sum(-1), 1.0, atol=1e-5)

    print("KERNEL_OK")
</pallas_src>

<mosaic_0001>
module attributes {stable_mosaic.version = 11 : i64} {
  func.func @_embedding_kernel(%arg0: i32, %arg1: memref<8x1xi32, #tpu.memory_space<vmem>>, %arg2: memref<32x32xf32, #tpu.memory_space<vmem>>, %arg3: memref<8x32xf32, #tpu.memory_space<vmem>>, %arg4: memref<8x32xf32, #tpu.memory_space<vmem>>) attributes {dimension_semantics = [#tpu.dimension_semantics<parallel>], iteration_bounds = array<i64: 2>, scalar_prefetch = 0 : i64, scratch_operands = 0 : i64, tpu.core_type = #tpu.core_type<tc>, window_params = [{transform_indices = @transform_0, window_bounds = array<i64: 8, 1>}, {pipeline_mode = #tpu.pipeline_mode<synchronous>, transform_indices = @transform_1, window_bounds = array<i64: 32, 32>}, {transform_indices = @transform_2, window_bounds = array<i64: 8, 32>}, {transform_indices = @transform_3, window_bounds = array<i64: 8, 32>}]} {
    %c0 = arith.constant 0 : index
    %c0_0 = arith.constant 0 : index
    %0 = vector.load %arg1[%c0, %c0_0] : memref<8x1xi32, #tpu.memory_space<vmem>>, vector<8x1xi32>
    %c0_1 = arith.constant 0 : index
    %c0_2 = arith.constant 0 : index
    %1 = vector.load %arg2[%c0_1, %c0_2] : memref<32x32xf32, #tpu.memory_space<vmem>>, vector<32x32xf32>
    %c0_i32 = arith.constant 0 : i32
    %c31_i32 = arith.constant 31 : i32
    %2 = vector.broadcast %c0_i32 : i32 to vector<8x1xi32>
    %3 = arith.maxsi %2, %0 : vector<8x1xi32>
    %4 = vector.broadcast %c31_i32 : i32 to vector<8x1xi32>
    %5 = arith.minsi %4, %3 : vector<8x1xi32>
    %6 = tpu.iota {dimensions = array<i32: 1>} : vector<8x32xi32>
    %7 = vector.broadcast %5 : vector<8x1xi32> to vector<8x32xi32>
    %8 = arith.cmpi eq, %6, %7 : vector<8x32xi32>
    %9 = arith.extui %8 : vector<8x32xi1> to vector<8x32xi32>
    %10 = arith.sitofp %9 : vector<8x32xi32> to vector<8x32xf32>
    %cst = arith.constant dense<0.000000e+00> : vector<8x32xf32>
    %11 = tpu.matmul %10, %1, %cst {dimension_numbers = #tpu.dot_dimension_numbers<[1], [0], [0], [1], [0, 0, 1, 1], [], []>} : vector<8x32xf32>, vector<32x32xf32>, vector<8x32xf32> -> vector<8x32xf32>
    %c0_3 = arith.constant 0 : index
    %c0_4 = arith.constant 0 : index
    %12 = vector.load %arg3[%c0_3, %c0_4] : memref<8x32xf32, #tpu.memory_space<vmem>>, vector<8x32xf32>
    tpu.vector_store %arg3[%c0_3, %c0_4], %11 {strides = array<i32>} : memref<8x32xf32, #tpu.memory_space<vmem>>, vector<8x32xf32>,
    %cst_5 = arith.constant dense<0xFF800000> : vector<8xf32>
    %13 = vector.multi_reduction <maximumf>, %11, %cst_5 [1] : vector<8x32xf32> to vector<8xf32>
    %14 = vector.shape_cast %13 : vector<8xf32> to vector<8x1xf32>
    %15 = vector.broadcast %14 : vector<8x1xf32> to vector<8x32xf32>
    %16 = arith.subf %11, %15 : vector<8x32xf32>
    %17 = math.exp %16 : vector<8x32xf32>
    %cst_6 = arith.constant dense<0.000000e+00> : vector<8xf32>
    %18 = vector.multi_reduction <add>, %17, %cst_6 [1] : vector<8x32xf32> to vector<8xf32>
    %19 = vector.shape_cast %18 : vector<8xf32> to vector<8x1xf32>
    %20 = vector.broadcast %19 : vector<8x1xf32> to vector<8x32xf32>
    %21 = arith.divf %17, %20 : vector<8x32xf32>
    %c0_7 = arith.constant 0 : index
    %c0_8 = arith.constant 0 : index
    %22 = vector.load %arg4[%c0_7, %c0_8] : memref<8x32xf32, #tpu.memory_space<vmem>>, vector<8x32xf32>
    tpu.vector_store %arg4[%c0_7, %c0_8], %21 {strides = array<i32>} : memref<8x32xf32, #tpu.memory_space<vmem>>, vector<8x32xf32>,
    return
  }
  func.func @transform_0(%arg0: i32) -> (i32, i32) {
    %c0_i32 = arith.constant 0 : i32
    %c0_i32_0 = arith.constant 0 : i32
    return %arg0, %c0_i32 : i32, i32
  }
  func.func @transform_1(%arg0: i32) -> (i32, i32) {
    %c0_i32 = arith.constant 0 : i32
    %c0_i32_0 = arith.constant 0 : i32
    %c0_i32_1 = arith.constant 0 : i32
    return %c0_i32, %c0_i32_0 : i32, i32
  }
  func.func @transform_2(%arg0: i32) -> (i32, i32) {
    %c0_i32 = arith.constant 0 : i32
    %c0_i32_0 = arith.constant 0 : i32
    return %arg0, %c0_i32 : i32, i32
  }
  func.func @transform_3(%arg0: i32) -> (i32, i32) {
    %c0_i32 = arith.constant 0 : i32
    %c0_i32_0 = arith.constant 0 : i32
    return %arg0, %c0_i32 : i32, i32
  }
}

</mosaic_0001>

<llo_original>
// kernel: tpu_custom_call.1
$region0: #{tpu_custom_call.1}
  #allocation0 [shape = 'u32[]', space=smem, size = 0x4, offset = 0x4, fixed_abs, tag = 'smem constant byte address 0x4 - core index']
  #allocation1 [shape = 'u32[144,128]{1,0:T(1,128)}', space=vmem, size = 0x12000, scoped, tag = 'internal scratch']
  %s0 = inlined_call_operand.vmem [shape: s32[16,1], index: 0, kind: input, shape index: {}]
  %s1 = inlined_call_operand.hbm [shape: f32[32,32], index: 1, kind: input, shape index: {}]
  %s2 = inlined_call_operand.hbm [shape: f32[16,32], index: 2, kind: output, shape index: {0}]
  %s3 = inlined_call_operand.hbm [shape: f32[16,32], index: 3, kind: output, shape index: {1}]
  %4 = xla_tuple %s2, %s3
  %s5 = sld [smem:[#allocation0]]
  $region53: #{tpu_custom_call.1} parent=0
    _
  %s7 = ssub.s32 1, %s5
  %s8 = scalar_select 0, %s7, %s5
  $region1: #{tpu_custom_call.1} parent=0
    #allocation2 [shape = 'u8[16384]{0}', space=vmem, size = 0x4000, scoped, tag = 'input window, operand 1, single buffered']
    #allocation3 [shape = 's32[2]{0}', space=sflag, size = 0x8, scoped, tag = 'scoped memory for tpu_custom_call.1']
    #allocation4 [shape = 's32[2]{0}', space=sflag, size = 0x8, scoped, tag = 'scoped memory for tpu_custom_call.1']
    #allocation5 [shape = 'u8[8192]{0}', space=vmem, size = 0x2000, scoped, tag = 'output window, operand 0']
    #allocation6 [shape = 'u8[8192]{0}', space=vmem, size = 0x2000, scoped, tag = 'output window, operand 1']
    #allocation7 [shape = 's32[2]{0}', space=sflag, size = 0x8, scoped, tag = 'scoped memory for tpu_custom_call.1']
    %9 = vsyncpa [#allocation3], 0
    %10 = vsyncpa [#allocation4], 0
    %s11 = scalar_lea.sflag [#allocation4], 1
    %12 = vsyncpa %s11, 0
    %13 = vsyncpa [#allocation7], 0
    %s14 = scalar_lea.sflag [#allocation7], 1
    %15 = vsyncpa %s14, 0
    loop: start=0, step=1, limit=4
    $region2: #{tpu_custom_call.1} parent=1 // loop_pre_header
      _
    $region3: #{tpu_custom_call.1} parent=1 // loop_header
      %s17 = sphi 0, %s21
      %p18 = scmp.ge.s32.totalorder %s17, 4
      %s27 = sphi 0, %s29
      %s30 = sphi 0, %s27
      %s31 = sphi 0, %s30
      %s47 = sphi 0, %s31
      %s51 = sphi 0, %s51
      %s53 = sphi 0, %s51
      %s54 = sphi 0, %s53
      %s68 = sphi 0, %s54
      %s74 = sphi 0, %s76
      %s77 = sphi 0, %s74
      %s78 = sphi 0, %s77
      %s94 = sphi 0, %s78
      %s100 = sphi 0, %s102
      %s103 = sphi 0, %s100
      %s104 = sphi 0, %s103
      %s120 = sphi 0, %s104
    $region4: #{tpu_custom_call.1} parent=1 // loop_header_branch
      %20 = sbr.rel (%p18) target = $region8
    $region5: #{tpu_custom_call.1} parent=1 // loop_body
      %s22 = ssub.s32 %s17, 1
      %s23 = ssub.s32 %s17, 2
      %s24 = sadd.s32 %s17, 1
      %s25 = ssub.s32 %s17, %s24
      %p26 = scmp.eq.s32.totalorder %s25, 0
      %s28 = sadd.s32 %s27, 1
      %s29 = scalar_select %p26, %s27, %s28
      %p32 = pneg %p26
      %p33 = scmp.eq.s32.totalorder %s17, 1
      %p34 = por %p32, %p33
      %p35 = scmp.ne.s32.totalorder %s27, %s30
      %p36 = scmp.eq.s32.totalorder %s17, 0
      %p37 = por %p35, %p36
      %p38 = scmp.ne.s32.totalorder %s27, %s30
      %p39 = scmp.eq.s32.totalorder %s22, 1
      %p40 = por %p38, %p39
      %p41 = scmp.ne.s32.totalorder %s30, %s31
      %p42 = scmp.eq.s32.totalorder %s22, 0
      %p43 = por %p41, %p42
      %p44 = scmp.ne.s32.totalorder %s30, %s31
      %p45 = scmp.eq.s32.totalorder %s23, 1
      %p46 = por %p44, %p45
      %p48 = scmp.ne.s32.totalorder %s31, %s47
      %p49 = scmp.eq.s32.totalorder %s23, 0
      %p50 = por %p48, %p49
      %s52 = sadd.s32 %s51, 1
      %p55 = scmp.eq.s32.totalorder %s17, 1
      %p56 = scmp.ne.s32.totalorder %s51, %s53
      %p57 = scmp.eq.s32.totalorder %s17, 0
      %p58 = por %p56, %p57
      %p59 = scmp.ne.s32.totalorder %s51, %s53
      %p60 = scmp.eq.s32.totalorder %s22, 1
      %p61 = por %p59, %p60
      %p62 = scmp.ne.s32.totalorder %s53, %s54
      %p63 = scmp.eq.s32.totalorder %s22, 0
      %p64 = por %p62, %p63
      %p65 = scmp.ne.s32.totalorder %s53, %s54
      %p66 = scmp.eq.s32.totalorder %s23, 1
      %p67 = por %p65, %p66
      %p69 = scmp.ne.s32.totalorder %s54, %s68
      %p70 = scmp.eq.s32.totalorder %s23, 0
      %p71 = por %p69, %p70
      %s72 = ssub.s32 %s17, %s24
      %p73 = scmp.eq.s32.totalorder %s72, 0
      %s75 = sadd.s32 %s74, 1
      %s76 = scalar_select %p73, %s74, %s75
      %p79 = pneg %p73
      %p80 = scmp.eq.s32.totalorder %s17, 1
      %p81 = por %p79, %p80
      %p82 = scmp.ne.s32.totalorder %s74, %s77
      %p83 = scmp.eq.s32.totalorder %s17, 0
      %p84 = por %p82, %p83
      %p85 = scmp.ne.s32.totalorder %s74, %s77
      %p86 = scmp.eq.s32.totalorder %s22, 1
      %p87 = por %p85, %p86
      %p88 = scmp.ne.s32.totalorder %s77, %s78
      %p89 = scmp.eq.s32.totalorder %s22, 0
      %p90 = por %p88, %p89
      %p91 = scmp.ne.s32.totalorder %s77, %s78
      %p92 = scmp.eq.s32.totalorder %s23, 1
      %p93 = por %p91, %p92
      %p95 = scmp.ne.s32.totalorder %s78, %s94
      %p96 = scmp.eq.s32.totalorder %s23, 0
      %p97 = por %p95, %p96
      %s98 = ssub.s32 %s17, %s24
      %p99 = scmp.eq.s32.totalorder %s98, 0
      %s101 = sadd.s32 %s100, 1
      %s102 = scalar_select %p99, %s100, %s101
      %p105 = pneg %p99
      %p106 = scmp.eq.s32.totalorder %s17, 1
      %p107 = por %p105, %p106
      %p108 = scmp.ne.s32.totalorder %s100, %s103
      %p109 = scmp.eq.s32.totalorder %s17, 0
      %p110 = por %p108, %p109
      %p111 = scmp.ne.s32.totalorder %s100, %s103
      %p112 = scmp.eq.s32.totalorder %s22, 1
      %p113 = por %p111, %p112
      %p114 = scmp.ne.s32.totalorder %s103, %s104
      %p115 = scmp.eq.s32.totalorder %s22, 0
      %p116 = por %p114, %p115
      %p117 = scmp.ne.s32.totalorder %s103, %s104
      %p118 = scmp.eq.s32.totalorder %s23, 1
      %p119 = por %p117, %p118
      %p121 = scmp.ne.s32.totalorder %s104, %s120
      %p122 = scmp.eq.s32.totalorder %s23, 0
      %p123 = por %p121, %p122
      %p124 = scmp.le.s32.totalorder 1, %s17
      %p125 = scmp.lt.s32.totalorder %s17, 3
      %p126 = pnand %p124, %p125
      %p127 = pneg %p126
      // Predicated region
      $region9: #{tpu_custom_call.1} parent=5 // pred_check
        _
      $region10: #{tpu_custom_call.1} parent=5 // pred_check_branch
        %129 = sbr.rel (%p126) target = $region12
      $region11: #{tpu_custom_call.1} parent=5 // pred_region
        %s130 = ssub.s32 %s17, 1
        // Predicated region
        $region13: #{tpu_custom_call.1} parent=11 // pred_check
          %p131 = pneg %p64
        $region14: #{tpu_custom_call.1} parent=11 // pred_check_branch
          %133 = sbr.rel (%p131) target = $region16
        $region15: #{tpu_custom_call.1} parent=11 // pred_region
          %s135 = ssub.s32 512, 512
          %136 = vsyncadd [#allocation3], %s135
          %s137 = sshll.u32 [#allocation2], 4
          %s138 = int_to_ptr.vmem [resolvable:$true] %s137
          %143 = dma.hbm_to_vmem [thread:$0]  %s1, 512, %s138, [#allocation3], 128, 128, 8
        $region16: #{tpu_custom_call.1} parent=11 // pred_fallthru
          _
      $region12: #{tpu_custom_call.1} parent=5 // pred_fallthru
        _
      %p144 = scmp.lt.s32.totalorder %s17, 2
      // Predicated region
      $region17: #{tpu_custom_call.1} parent=5 // pred_check
        %p145 = pneg %p144
      $region18: #{tpu_custom_call.1} parent=5 // pred_check_branch
        %147 = sbr.rel (%p145) target = $region20
      $region19: #{tpu_custom_call.1} parent=5 // pred_region
        // Predicated region
        $region21: #{tpu_custom_call.1} parent=19 // pred_check
          %p148 = pneg %p37
        $region22: #{tpu_custom_call.1} parent=19 // pred_check_branch
          %150 = sbr.rel (%p148) target = $region24
        $region23: #{tpu_custom_call.1} parent=19 // pred_region
          %p151 = scmp.lt.s32.totalorder %s17, 1
          %s152 = scalar_select %p151, %s17, 1
          %s153 = smul.addr %s152, 8
          %s154 = scalar_lea.vmem %s0, %s153
        $region24: #{tpu_custom_call.1} parent=19 // pred_fallthru
          _
      $region20: #{tpu_custom_call.1} parent=5 // pred_fallthru
        _
      %p155 = scmp.le.s32.totalorder 1, %s17
      %p156 = scmp.lt.s32.totalorder %s17, 3
      %p157 = pnand %p155, %p156
      %p158 = pneg %p157
      // Predicated region
      $region25: #{tpu_custom_call.1} parent=5 // pred_check
        _
      $region26: #{tpu_custom_call.1} parent=5 // pred_check_branch
        %160 = sbr.rel (%p157) target = $region28
      $region27: #{tpu_custom_call.1} parent=5 // pred_region
        %s161 = ssub.s32 %s17, 1
        // Predicated region
        $region29: #{tpu_custom_call.1} parent=27 // pred_check
          %p162 = pneg %p64
        $region30: #{tpu_custom_call.1} parent=27 // pred_check_branch
          %164 = sbr.rel (%p162) target = $region32
        $region31: #{tpu_custom_call.1} parent=27 // pred_region
          %165 = dma.done [#allocation3], 512
        $region32: #{tpu_custom_call.1} parent=27 // pred_fallthru
          _
        %p166 = scmp.lt.s32.totalorder %s22, 1
        %s167 = scalar_select %p166, %s22, 1
        %s168 = smul.addr %s167, 8
        %s169 = scalar_lea.vmem %s0, %s168
        %p170 = pneg %p43
        %p171 = pneg %p40
        %p172 = pneg %p64
        %p173 = pneg %p61
        %p174 = pneg %p90
        %p175 = pneg %p87
        %s176 = sand.u32 %s77, 1
        %s177 = scalar_lea.sflag [#allocation4], %s176
        %s178 = sand.u32 %s77, 1
        %s179 = smul.addr %s178, 8
        %s180 = scalar_lea.vmem [#allocation5], %s179
        %p181 = pneg %p116
        %p182 = pneg %p113
        %s183 = sand.u32 %s103, 1
        %s184 = scalar_lea.sflag [#allocation7], %s183
        %s185 = sand.u32 %s103, 1
        %s186 = smul.addr %s185, 8
        %s187 = scalar_lea.vmem [#allocation6], %s186
        %p188 = scmp.lt.s32.totalorder %s22, 1
        %s189 = scalar_select %p188, %s22, 1
        %s190 = smul.addr %s189, 8
        %s191 = scalar_lea.vmem %s0, %s190
        %v192 = vld [vmem:[%s191] sm:$0xff]
        %v193 = vld [vmem:[#allocation2] sm:$0xff]
        %v194 = vld [vmem:[#allocation2 + $0x8] sm:$0xff]
        %v195 = vld [vmem:[#allocation2 + $0x10] sm:$0xff]
        %v196 = vld [vmem:[#allocation2 + $0x18] sm:$0xff]
        %vm197 = vcmp.gt.s32.totalorder %v192, 0
        %v198 = vsel %vm197, %v192, 0
        %vm199 = vcmp.lt.s32.totalorder %v198, 31
        %v200 = vsel %vm199, %v198, 31
        %v201 = vlaneseq
        %v202 = vand.u32 %v201, 127
        %203 = vset.pattern.permute.xlu0 0
        %204 = vperm.xlu0 %203, %v200
        %v205 = vpop.permute.xlu0 %204
        %vm206 = vcmp.eq.s32.totalorder %v202, %v205
        %v207 = vsel %vm206, 1, 0
        %v208 = vcvt.s32.f32 %v207
        %vm209 = vcmask 261120
        %v211 = vsel %vm209, %v208, 0
        %213 = vmatprep.subr.mxu0 0.0
        %214 = vmatpush1.msra.mxu0 %v193
        %215 = vmatprep.subr.mxu0 0.0
        %216 = vmatpush1.msra.mxu0 %v194
        %217 = vmatprep.subr.mxu0 0.0
        %218 = vmatpush1.msra.mxu0 %v195
        %219 = vmatprep.subr.mxu0 0.0
        %220 = vmatpush1.msra.mxu0 %v196
        %221 = vmatprep.subr.mxu0 0.0
        %222 = vmatpush1.msra.mxu0 0.0
        %223 = vmatprep.subr.mxu0 0.0
        %224 = vmatpush1.msra.mxu0 0.0
        %225 = vmatprep.subr.mxu0 0.0
        %226 = vmatpush1.msra.mxu0 0.0
        %227 = vmatprep.subr.mxu0 0.0
        %228 = vmatpush1.msra.mxu0 0.0
        %229 = vmatprep.subr.mxu0 0.0
        %230 = vmatpush1.msra.mxu0 0.0
        %231 = vmatprep.subr.mxu0 0.0
        %232 = vmatpush1.msra.mxu0 0.0
        %233 = vmatprep.subr.mxu0 0.0
        %234 = vmatpush1.msra.mxu0 0.0
        %235 = vmatprep.subr.mxu0 0.0
        %236 = vmatpush1.msra.mxu0 0.0
        %237 = vmatprep.subr.mxu0 0.0
        %238 = vmatpush1.msra.mxu0 0.0
        %239 = vmatprep.subr.mxu0 0.0
        %240 = vmatpush1.msra.mxu0 0.0
        %241 = vmatprep.subr.mxu0 0.0
        %242 = vmatpush1.msra.mxu0 0.0
        %243 = vmatprep.subr.mxu0 0.0
        %244 = vmatpush1.msra.mxu0 0.0
        %245 = vmatprep.subr.mxu0 0.0
        %246 = vmatpush1.msra.mxu0 0.0
        %247 = vmatprep.subr.mxu0 0.0
        %248 = vmatpush1.msra.mxu0 0.0
        %249 = vmatprep.subr.mxu0 0.0
        %250 = vmatpush1.msra.mxu0 0.0
        %251 = vmatprep.subr.mxu0 0.0
        %252 = vmatpush1.msra.mxu0 0.0
        %253 = vmatprep.subr.mxu0 0.0
        %254 = vmatpush1.msra.mxu0 0.0
        %255 = vmatprep.subr.mxu0 0.0
        %256 = vmatpush1.msra.mxu0 0.0
        %257 = vmatprep.subr.mxu0 0.0
        %258 = vmatpush1.msra.mxu0 0.0
        %259 = vmatprep.subr.mxu0 0.0
        %260 = vmatpush1.msra.mxu0 0.0
        %261 = vmatprep.subr.mxu0 0.0
        %262 = vmatpush1.msra.mxu0 0.0
        %263 = vmatprep.subr.mxu0 0.0
        %264 = vmatpush1.msra.mxu0 0.0
        %265 = vmatprep.subr.mxu0 0.0
        %266 = vmatpush1.msra.mxu0 0.0
        %267 = vmatprep.subr.mxu0 0.0
        %268 = vmatpush1.msra.mxu0 0.0
        %269 = vmatprep.subr.mxu0 0.0
        %270 = vmatpush1.msra.mxu0 0.0
        %271 = vmatprep.subr.mxu0 0.0
        %272 = vmatpush1.msra.mxu0 0.0
        %273 = vmatprep.subr.mxu0 0.0
        %274 = vmatpush1.msra.mxu0 0.0
        %275 = vmatprep.subr.mxu0 0.0
        %276 = vmatpush1.msra.mxu0 0.0
        %277 = vmatprep.mubr.f32.mxu0 0.0
        %278 = vmatmul.mubr.f32.gmra.mrb[0].mxu0 %v211
        %v279 = vpop.f32.mrb[0].mxu0
        %v280 = vadd.f32 0.0, %v279
        %v281 = vpop.f32.mrb[0].mxu0
        %282 = vdwg.mxu0
        %283 = vst.msk [vmem:[%s180] sm:$0xff] %vm209, %v280
        %v284 = vsel %vm209, %v280, -inf
        %285 = vmax.xlane.f32.xlu0 %v284
        %v286 = vpop.xlane.xlu0 %285
        %v287 = vsub.f32 %v280, %v286
        %v288 = vmul.f32 %v287, 1.442695
        %v289 = vpow.pop %v288
        %v290 = vsel %vm209, %v289, 0.0
        %291 = vadd.xlane.f32.xlu0 %v290
        %v292 = vpop.xlane.xlu0 %291
        %v293 = vrcp.pop %v292
        %v294 = vmul.f32 %v289, %v293
        %295 = vst.msk [vmem:[%s187] sm:$0xff] %vm209, %v294
        %s296 = sand.u32 %s77, 1
        %s297 = scalar_lea.sflag [#allocation4], %s296
        %s298 = sand.u32 %s77, 1
        %s299 = smul.addr %s298, 8
        %s300 = scalar_lea.vmem [#allocation5], %s299
        %s301 = sand.u32 %s103, 1
        %s302 = scalar_lea.sflag [#allocation7], %s301
        %s303 = sand.u32 %s103, 1
        %s304 = smul.addr %s303, 8
        %s305 = scalar_lea.vmem [#allocation6], %s304
        // Predicated region
        $region33: #{tpu_custom_call.1} parent=27 // pred_check
          %p306 = pneg %p87
        $region34: #{tpu_custom_call.1} parent=27 // pred_check_branch
          %308 = sbr.rel (%p306) target = $region36
        $region35: #{tpu_custom_call.1} parent=27 // pred_region
          %s310 = ssub.s32 128, 128
          %311 = vsyncadd %s297, %s310
          %s312 = smul.addr %s22, 128
          %s313 = scalar_lea.hbm %s2, %s312
          %s315 = sshll.u32 %s300, 4
          %s316 = int_to_ptr.vmem [resolvable:$true] %s315
          %318 = dma.vmem_to_hbm [thread:$0]  %s316, 128, %s313, %s297
        $region36: #{tpu_custom_call.1} parent=27 // pred_fallthru
          _
        // Predicated region
        $region37: #{tpu_custom_call.1} parent=27 // pred_check
          %p319 = pneg %p113
        $region38: #{tpu_custom_call.1} parent=27 // pred_check_branch
          %321 = sbr.rel (%p319) target = $region40
        $region39: #{tpu_custom_call.1} parent=27 // pred_region
          %s323 = ssub.s32 128, 128
          %324 = vsyncadd %s302, %s323
          %s325 = smul.addr %s22, 128
          %s326 = scalar_lea.hbm %s3, %s325
          %s328 = sshll.u32 %s305, 4
          %s329 = int_to_ptr.vmem [resolvable:$true] %s328
          %331 = dma.vmem_to_hbm [thread:$0]  %s329, 128, %s326, %s302
        $region40: #{tpu_custom_call.1} parent=27 // pred_fallthru
          _
      $region28: #{tpu_custom_call.1} parent=5 // pred_fallthru
        _
      %p332 = scmp.le.s32.totalorder 2, %s17
      // Predicated region
      $region41: #{tpu_custom_call.1} parent=5 // pred_check
        %p333 = pneg %p332
      $region42: #{tpu_custom_call.1} parent=5 // pred_check_branch
        %335 = sbr.rel (%p333) target = $region44
      $region43: #{tpu_custom_call.1} parent=5 // pred_region
        %s336 = ssub.s32 %s17, 2
        // Predicated region
        $region45: #{tpu_custom_call.1} parent=43 // pred_check
          %p337 = pneg %p93
        $region46: #{tpu_custom_call.1} parent=43 // pred_check_branch
          %339 = sbr.rel (%p337) target = $region48
        $region47: #{tpu_custom_call.1} parent=43 // pred_region
          %s340 = sand.u32 %s78, 1
          %s341 = scalar_lea.sflag [#allocation4], %s340
          %s342 = sand.u32 %s78, 1
          %s343 = smul.addr %s342, 8
          %s344 = scalar_lea.vmem [#allocation5], %s343
          %345 = dma.done %s341, 128
        $region48: #{tpu_custom_call.1} parent=43 // pred_fallthru
          _
        // Predicated region
        $region49: #{tpu_custom_call.1} parent=43 // pred_check
          %p346 = pneg %p119
        $region50: #{tpu_custom_call.1} parent=43 // pred_check_branch
          %348 = sbr.rel (%p346) target = $region52
        $region51: #{tpu_custom_call.1} parent=43 // pred_region
          %s349 = sand.u32 %s104, 1
          %s350 = scalar_lea.sflag [#allocation7], %s349
          %s351 = sand.u32 %s104, 1
          %s352 = smul.addr %s351, 8
          %s353 = scalar_lea.vmem [#allocation6], %s352
          %354 = dma.done %s350, 128
        $region52: #{tpu_custom_call.1} parent=43 // pred_fallthru
          _
      $region44: #{tpu_custom_call.1} parent=5 // pred_fallthru
        _
    $region6: #{tpu_custom_call.1} parent=1 // loop_footer
      %s21 = sadd.s32 1, %s17
    $region7: #{tpu_custom_call.1} parent=1 // loop_footer_branch
      %16 = sbr.rel target = $region3
    $region8: #{tpu_custom_call.1} parent=1 // loop_exit
      _
    %355 = vsyncpa [#allocation3], 1
    %s356 = scalar_lea.sflag [#allocation3], 1
    %357 = vsyncpa %s356, 1
    %358 = vsyncpa [#allocation4], 1
    %s359 = scalar_lea.sflag [#allocation4], 1
    %360 = vsyncpa %s359, 1
    %361 = vsyncpa [#allocation7], 1
    %s362 = scalar_lea.sflag [#allocation7], 1
    %363 = vsyncpa %s362, 1

</llo_original>
